<compile_context>
chip_gen: v7x
topology: tpu7x:2x2x1
jax: 0.10.0
libtpu: 0.0.40
codegen_flags: <defaults>
</compile_context>

<pallas_src>
import math

import jax
import jax.numpy as jnp
from jax.experimental import pallas as pl
from jax.experimental.pallas import tpu as pltpu


# --------------------------------------------------------------------------- #
# Helpers
# --------------------------------------------------------------------------- #
def _round_up(n, m):
    return ((n + m - 1) // m) * m


def _vmem_capacity_bytes():
    """Per-core VMEM capacity, with a conservative fallback (v7x = 64 MiB/TC)."""
    try:
        info = pltpu.get_tpu_info()
        cap = getattr(info, "vmem_capacity_bytes", None)
        if cap:
            return int(cap)
    except Exception:
        pass
    return 64 << 20


def _auto_bn(internal, col_bytes, budget):
    """Pick an N (internal) tile so resident weight tiles stay under `budget`.

    Prefers 256-wide multiples (v6e/v7x MXU is 2x256 systolic); falls back to
    128 (v5e MXU width / lane width).  Raises instead of silently emitting a
    tile that cannot fit (review: no silent fallback on v7x's 64 MiB VMEM).
    """
    if internal * col_bytes <= budget:
        return internal
    for unit in (256, 128):
        if internal % unit:
            continue
        cand = (budget // (col_bytes * unit)) * unit
        cand = max(unit, min(cand, internal))
        while cand > unit and internal % cand:
            cand -= unit
        if internal % cand == 0 and cand * col_bytes <= budget:
            return cand
    raise ValueError(
        "internal_size=%d cannot be tiled to fit resident weights in VMEM "
        "(budget=%d bytes); pad internal_size to a multiple of 128." %
        (internal, budget))


def _const_spec(shape, index_map, single_buffer):
    if single_buffer:
        return pl.BlockSpec(shape, index_map, pipeline_mode=pl.Buffered(1))
    return pl.BlockSpec(shape, index_map)


# --------------------------------------------------------------------------- #
# One-time parameter prep (hoisted out of the per-timestep path)
# --------------------------------------------------------------------------- #
def prepare_rnn_cell_params(w_x, b_x, w_h, b_h, *, param_dtype=None):
    """Transpose the 1x1-conv weights once and pre-sum the biases.

    w_x: (internal, input_size, 1, 1)   PyTorch Conv2d(k=1) weight layout
    w_h: (internal, hidden_size, 1, 1)
    b_x, b_h: (internal,)

    Returns:
      wx: (input_size,  internal)  pre-transposed
      wh: (hidden_size, internal)  pre-transposed
      b:  (1, internal) f32        pre-summed bias
    """
    internal, in_f = w_x.shape[0], w_x.shape[1]
    hid_f = w_h.shape[1]
    wx = jnp.transpose(w_x.reshape(internal, in_f))   # (in_f, internal)
    wh = jnp.transpose(w_h.reshape(internal, hid_f))  # (hid_f, internal)
    b = (b_x.astype(jnp.float32) + b_h.astype(jnp.float32)).reshape(1, internal)
    if param_dtype is not None:
        wx = wx.astype(param_dtype)
        wh = wh.astype(param_dtype)
    return wx, wh, b


# --------------------------------------------------------------------------- #
# Single-step pre-activation kernel:  linear_x(x) + linear_h(h)
# --------------------------------------------------------------------------- #
def _pre_activation_kernel(x_ref, h_ref, wx_ref, wh_ref, b_ref, out_ref):
    # x_ref:  (bm, in_f)   h_ref: (bm, hid_f)
    # wx_ref: (in_f, bn)   wh_ref: (hid_f, bn)   b_ref: (1, bn) f32
    acc = jnp.dot(x_ref[...], wx_ref[...], preferred_element_type=jnp.float32)
    acc = acc + jnp.dot(h_ref[...], wh_ref[...],
                        preferred_element_type=jnp.float32)
    out_ref[...] = (acc + b_ref[...]).astype(out_ref.dtype)


def rnn_cell_pre_activation(x, h, wx, wh, b, *, bm=1024, bn=None,
                            compute_dtype=None):
    """Fused linear_x(x) + linear_h(h) pre-activation (one pallas_call).

    x: (B, input_size), h: (B, hidden_size)
    wx/wh/b: from prepare_rnn_cell_params
    bm: max batch-tile rows. Whole batch runs as ONE full-dim tile when B <= bm
        (no padding, no wrapper concat).
    bn: optional tile over `internal`; must divide internal and be a multiple
        of 128 (prefer 256 on v6e/v7x).  Setting bn = internal // 2 also lets
        the "parallel" N axis shard across v7x's two TensorCores.
    compute_dtype: e.g. jnp.bfloat16 (f32 accumulation + f32 bias kept).
    """
    B, in_f = x.shape
    hid_f = h.shape[1]
    internal = wx.shape[1]
    K = in_f + hid_f
    out_dtype = x.dtype

    if compute_dtype is not None:
        x = x.astype(compute_dtype)
        h = h.astype(compute_dtype)
        wx = wx.astype(compute_dtype)
        wh = wh.astype(compute_dtype)
    b = b.astype(jnp.float32).reshape(1, internal)

    act_item = jnp.dtype(x.dtype).itemsize
    w_item = jnp.dtype(wx.dtype).itemsize
    out_item = jnp.dtype(out_dtype).itemsize

    # --- batch tiling: whole batch in one full-dim tile whenever it fits. ---
    if B <= max(bm, 8):
        bm_eff, B_pad = B, B
    else:
        bm_eff = _round_up(min(bm, B), 8)
        B_pad = _round_up(B, bm_eff)
        if B_pad != B:  # only the rare huge-batch tiled path pads
            x = jnp.pad(x, ((0, B_pad - B), (0, 0)))
            h = jnp.pad(h, ((0, B_pad - B), (0, 0)))
    gi = B_pad // bm_eff

    # --- N (internal) tiling, auto-derived from the actual VMEM capacity. ---
    vmem_cap = _vmem_capacity_bytes()
    if bn is None:
        bn_eff = _auto_bn(internal, K * w_item, vmem_cap // 3)
    else:
        if internal % bn or bn % 128:
            raise ValueError(
                "bn=%d must divide internal=%d and be a multiple of 128 "
                "(prefer 256 on v6e/v7x)" % (bn, internal))
        bn_eff = bn
    gn = internal // bn_eff
    weights_const = gn == 1  # safe to single-buffer only if truly constant

    # VMEM budget with headroom, capped at ~75% of the physical capacity
    # (~96 MiB on v5e/v6e, ~48 MiB on v7x).
    est = (2 * bm_eff * K * act_item
           + (1 if weights_const else 2) * K * bn_eff * w_item
           + (1 if weights_const else 2) * bn_eff * 4
           + 2 * bm_eff * bn_eff * out_item)
    vmem_limit = int(min(max(4 * est, 16 << 20), int(0.75 * vmem_cap)))

    cost = pl.CostEstimate(
        flops=int(2 * B_pad * K * internal),
        transcendentals=0,
        bytes_accessed=int(B_pad * K * act_item + K * internal * w_item
                           + internal * 4 + B_pad * internal * out_item))

    # Grid: N-tile axis OUTER, batch axis INNER -> weights are streamed from
    # HBM exactly once; only the (small) activation tiles are re-read per j.
    out = pl.pallas_call(
        _pre_activation_kernel,
        out_shape=jax.ShapeDtypeStruct((B_pad, internal), out_dtype),
        grid_spec=pltpu.PrefetchScalarGridSpec(
            num_scalar_prefetch=0,
            grid=(gn, gi),
            in_specs=[
                pl.BlockSpec((bm_eff, in_f), lambda j, i: (i, 0)),
                pl.BlockSpec((bm_eff, hid_f), lambda j, i: (i, 0)),
                _const_spec((in_f, bn_eff), lambda j, i: (0, j), weights_const),
                _const_spec((hid_f, bn_eff), lambda j, i: (0, j), weights_const),
                _const_spec((1, bn_eff), lambda j, i: (0, j), weights_const),
            ],
            out_specs=pl.BlockSpec((bm_eff, bn_eff), lambda j, i: (i, j)),
        ),
        compiler_params=pltpu.CompilerParams(
            dimension_semantics=("parallel", "parallel"),
            vmem_limit_bytes=vmem_limit),
        cost_estimate=cost,
    )(x, h, wx, wh, b)

    return out[:B] if B_pad != B else out


# --------------------------------------------------------------------------- #
# Sequence kernel: T recurrent steps inside ONE pallas_call
# (weights resident in VMEM across all timesteps; h carried in VMEM scratch)
# --------------------------------------------------------------------------- #
def _make_sequence_kernel(activation):
    def kernel(x_ref, h0_ref, wx_ref, wh_ref, b_ref, out_ref, h_scr):
        # x_ref:  (1, B, in_f)  timestep slab      h0_ref: (B, hid)
        # wx_ref: (in_f, hid)   wh_ref: (hid, hid) b_ref:  (1, hid) f32
        # out_ref:(1, B, hid)   h_scr:  (B, hid) f32  (carried hidden state)
        @pl.when(pl.program_id(0) == 0)
        def _():
            h_scr[...] = h0_ref[...].astype(jnp.float32)

        pre = (jnp.dot(x_ref[0], wx_ref[...], preferred_element_type=jnp.float32)
               + jnp.dot(h_scr[...].astype(wh_ref.dtype), wh_ref[...],
                         preferred_element_type=jnp.float32)
               + b_ref[...])
        h_new = activation(pre)
        h_scr[...] = h_new
        out_ref[0] = h_new.astype(out_ref.dtype)

    return kernel


def rnn_cell_sequence(x_seq, h0, wx, wh, b, *, activation=jnp.tanh,
                      compute_dtype=None):
    """h_t = activation(linear_x(x_t) + linear_h(h_{t-1})) for t = 0..T-1.

    Runs the whole time loop inside one kernel: the weights' block index is
    constant over the timestep grid axis (pl.Buffered(1)) so they are DMA'd
    from HBM once for the entire sequence, and T-1 kernel launches disappear.
    Requires internal_size == hidden_size (vanilla-RNN subclass).
    TODO(synk): the elementwise activation/gating is subclass-specific; tanh default.
    """
    T, B, in_f = x_seq.shape
    hid = h0.shape[1]
    internal = wx.shape[1]
    if internal != hid or wh.shape != (hid, hid):
        raise ValueError("the in-kernel recurrence requires internal_size == "
                         "hidden_size (got internal=%d, hidden=%d)"
                         % (internal, hid))
    out_dtype = h0.dtype

    if compute_dtype is not None:
        x_seq = x_seq.astype(compute_dtype)
        wx = wx.astype(compute_dtype)
        wh = wh.astype(compute_dtype)
    b = b.astype(jnp.float32).reshape(1, hid)

    act_item = jnp.dtype(x_seq.dtype).itemsize
    w_item = jnp.dtype(wx.dtype).itemsize
    out_item = jnp.dtype(out_dtype).itemsize
    h0_item = jnp.dtype(h0.dtype).itemsize

    vmem_cap = _vmem_capacity_bytes()
    est = (2 * B * in_f * act_item                      # x_t slabs (dbl-buf)
           + (in_f + hid) * hid * w_item + hid * 4      # resident weights+bias
           + B * hid * h0_item                          # h0
           + 2 * B * hid * out_item                     # output slabs
           + B * hid * 4)                               # h scratch
    vmem_limit = int(min(max(4 * est, 16 << 20), int(0.75 * vmem_cap)))

    cost = pl.CostEstimate(
        flops=int(2 * T * B * (in_f + hid) * hid),
        transcendentals=int(T * B * hid),
        bytes_accessed=int(T * B * in_f * act_item
                           + (in_f + hid) * hid * w_item + hid * 4
                           + B * hid * h0_item + T * B * hid * out_item))

    const = lambda t: (0, 0)
    out = pl.pallas_call(
        _make_sequence_kernel(activation),
        out_shape=jax.ShapeDtypeStruct((T, B, hid), out_dtype),
        grid_spec=pltpu.PrefetchScalarGridSpec(
            num_scalar_prefetch=0,
            grid=(T,),
            in_specs=[
                pl.BlockSpec((1, B, in_f), lambda t: (t, 0, 0)),
                pl.BlockSpec((B, hid), const, pipeline_mode=pl.Buffered(1)),
                pl.BlockSpec((in_f, hid), const, pipeline_mode=pl.Buffered(1)),
                pl.BlockSpec((hid, hid), const, pipeline_mode=pl.Buffered(1)),
                pl.BlockSpec((1, hid), const, pipeline_mode=pl.Buffered(1)),
            ],
            out_specs=pl.BlockSpec((1, B, hid), lambda t: (t, 0, 0)),
            scratch_shapes=[pltpu.VMEM((B, hid), jnp.float32)],
        ),
        compiler_params=pltpu.CompilerParams(
            dimension_semantics=("arbitrary",),   # h carried across timesteps
            vmem_limit_bytes=vmem_limit),
        cost_estimate=cost,
    )(x_seq, h0, wx, wh, b)
    return out


# --------------------------------------------------------------------------- #
# Demo / correctness checks
# --------------------------------------------------------------------------- #
def _conv1x1_init(key, out_ch, in_ch, dtype=jnp.float32):
    """Deterministic init matching nn.Conv2d(kernel_size=1) shapes/fan-in."""
    kw, kb = jax.random.split(key)
    bound = 1.0 / math.sqrt(in_ch)  # kernel_size = 1 -> fan_in = in_ch
    w = jax.random.uniform(kw, (out_ch, in_ch, 1, 1), dtype,
                           minval=-bound, maxval=bound)
    b = jax.random.uniform(kb, (out_ch,), dtype, minval=-bound, maxval=bound)
    return w, b


if __name__ == "__main__":
    key = jax.random.PRNGKey(0)
    kx, kh, kwx, kwh, kseq, kh0, kwx2, kwh2 = jax.random.split(key, 8)

    # ---------------- single-step pre-activation (the module's hot path) ----
    input_size, hidden_size, internal_size = 32, 64, 128
    batch = 16

    x = jax.random.normal(kx, (batch, input_size), jnp.float32)
    h = jax.random.normal(kh, (batch, hidden_size), jnp.float32)
    w_x, b_x = _conv1x1_init(kwx, internal_size, input_size)
    w_h, b_h = _conv1x1_init(kwh, internal_size, hidden_size)

    # One-time parameter prep (parameter-build time, NOT per timestep).
    wx_t, wh_t, b_sum = prepare_rnn_cell_params(w_x, b_x, w_h, b_h)

    # Pure-JAX reference: Linear-as-1x1-conv == x @ W.T + b, summed over x / h.
    ref = (x @ w_x.reshape(internal_size, input_size).T + b_x
           + h @ w_h.reshape(internal_size, hidden_size).T + b_h)

    out = jax.block_until_ready(rnn_cell_pre_activation(x, h, wx_t, wh_t, b_sum))
    assert out.shape == (batch, internal_size)
    assert jnp.allclose(out, ref, atol=1e-5, rtol=1e-5), "f32 pre-activation mismatch"

    # bf16 weights/activations (memory-roofline option on v5e/v6e; use fp8 on
    # v7x instead of int8).  f32 accumulation + f32 bias kept inside the kernel,
    # so only the input cast loses precision -> loose tolerance is expected.
    out_bf16 = jax.block_until_ready(
        rnn_cell_pre_activation(x, h, wx_t, wh_t, b_sum,
                                compute_dtype=jnp.bfloat16))
    assert out_bf16.dtype == jnp.float32
    assert jnp.allclose(out_bf16, ref, atol=5e-2, rtol=5e-2), "bf16 path mismatch"

    # ---------------- full sequence inside ONE kernel (weights resident) ----
    seq_len, in2, hid2 = 8, 32, 64  # vanilla-RNN subclass: internal == hidden
    x_seq = jax.random.normal(kseq, (seq_len, batch, in2), jnp.float32)
    h0 = jax.random.normal(kh0, (batch, hid2), jnp.float32)
    w_x2, b_x2 = _conv1x1_init(kwx2, hid2, in2)
    w_h2, b_h2 = _conv1x1_init(kwh2, hid2, hid2)
    wx2_t, wh2_t, b2_sum = prepare_rnn_cell_params(w_x2, b_x2, w_h2, b_h2)

    hs = jax.block_until_ready(rnn_cell_sequence(x_seq, h0, wx2_t, wh2_t, b2_sum))

    Wx2 = w_x2.reshape(hid2, in2)
    Wh2 = w_h2.reshape(hid2, hid2)
    href = h0
    refs = []
    for t in range(seq_len):
        href = jnp.tanh(x_seq[t] @ Wx2.T + b_x2 + href @ Wh2.T + b_h2)
        refs.append(href)
    ref_seq = jnp.stack(refs)
    assert hs.shape == (seq_len, batch, hid2)
    assert jnp.allclose(hs, ref_seq, atol=5e-4, rtol=5e-4), "sequence mismatch"

    print("KERNEL_OK")
</pallas_src>

<mosaic_0001>
module attributes {stable_mosaic.version = 11 : i64} {
  func.func @_pre_activation_kernel(%arg0: i32, %arg1: i32, %arg2: memref<16x32xf32, #tpu.memory_space<vmem>>, %arg3: memref<16x64xf32, #tpu.memory_space<vmem>>, %arg4: memref<32x128xf32, #tpu.memory_space<vmem>>, %arg5: memref<64x128xf32, #tpu.memory_space<vmem>>, %arg6: memref<1x128xf32, #tpu.memory_space<vmem>>, %arg7: memref<16x128xf32, #tpu.memory_space<vmem>>) attributes {dimension_semantics = [#tpu.dimension_semantics<parallel>, #tpu.dimension_semantics<parallel>], iteration_bounds = array<i64: 1, 1>, scalar_prefetch = 0 : i64, scratch_operands = 0 : i64, tpu.core_type = #tpu.core_type<tc>, window_params = [{transform_indices = @transform_0, window_bounds = array<i64: 16, 32>}, {transform_indices = @transform_1, window_bounds = array<i64: 16, 64>}, {pipeline_mode = #tpu.pipeline_mode<synchronous>, transform_indices = @transform_2, window_bounds = array<i64: 32, 128>}, {pipeline_mode = #tpu.pipeline_mode<synchronous>, transform_indices = @transform_3, window_bounds = array<i64: 64, 128>}, {pipeline_mode = #tpu.pipeline_mode<synchronous>, transform_indices = @transform_4, window_bounds = array<i64: 1, 128>}, {transform_indices = @transform_5, window_bounds = array<i64: 16, 128>}]} {
    %c0 = arith.constant 0 : index
    %c0_0 = arith.constant 0 : index
    %0 = vector.load %arg2[%c0, %c0_0] : memref<16x32xf32, #tpu.memory_space<vmem>>, vector<16x32xf32>
    %c0_1 = arith.constant 0 : index
    %c0_2 = arith.constant 0 : index
    %1 = vector.load %arg4[%c0_1, %c0_2] : memref<32x128xf32, #tpu.memory_space<vmem>>, vector<32x128xf32>
    %cst = arith.constant dense<0.000000e+00> : vector<16x128xf32>
    %2 = tpu.matmul %0, %1, %cst {dimension_numbers = #tpu.dot_dimension_numbers<[1], [0], [0], [1], [0, 0, 1, 1], [], []>} : vector<16x32xf32>, vector<32x128xf32>, vector<16x128xf32> -> vector<16x128xf32>
    %c0_3 = arith.constant 0 : index
    %c0_4 = arith.constant 0 : index
    %3 = vector.load %arg3[%c0_3, %c0_4] : memref<16x64xf32, #tpu.memory_space<vmem>>, vector<16x64xf32>
    %c0_5 = arith.constant 0 : index
    %c0_6 = arith.constant 0 : index
    %4 = vector.load %arg5[%c0_5, %c0_6] : memref<64x128xf32, #tpu.memory_space<vmem>>, vector<64x128xf32>
    %cst_7 = arith.constant dense<0.000000e+00> : vector<16x128xf32>
    %5 = tpu.matmul %3, %4, %cst_7 {dimension_numbers = #tpu.dot_dimension_numbers<[1], [0], [0], [1], [0, 0, 1, 1], [], []>} : vector<16x64xf32>, vector<64x128xf32>, vector<16x128xf32> -> vector<16x128xf32>
    %6 = arith.addf %2, %5 : vector<16x128xf32>
    %c0_8 = arith.constant 0 : index
    %c0_9 = arith.constant 0 : index
    %7 = vector.load %arg6[%c0_8, %c0_9] : memref<1x128xf32, #tpu.memory_space<vmem>>, vector<1x128xf32>
    %8 = vector.broadcast %7 : vector<1x128xf32> to vector<16x128xf32>
    %9 = arith.addf %6, %8 : vector<16x128xf32>
    %c0_10 = arith.constant 0 : index
    %c0_11 = arith.constant 0 : index
    %10 = vector.load %arg7[%c0_10, %c0_11] : memref<16x128xf32, #tpu.memory_space<vmem>>, vector<16x128xf32>
    tpu.vector_store %arg7[%c0_10, %c0_11], %9 {strides = array<i32>} : memref<16x128xf32, #tpu.memory_space<vmem>>, vector<16x128xf32>,
    return
  }
  func.func @transform_0(%arg0: i32, %arg1: i32) -> (i32, i32) {
    %c0_i32 = arith.constant 0 : i32
    %c0_i32_0 = arith.constant 0 : i32
    return %arg1, %c0_i32 : i32, i32
  }
  func.func @transform_1(%arg0: i32, %arg1: i32) -> (i32, i32) {
    %c0_i32 = arith.constant 0 : i32
    %c0_i32_0 = arith.constant 0 : i32
    return %arg1, %c0_i32 : i32, i32
  }
  func.func @transform_2(%arg0: i32, %arg1: i32) -> (i32, i32) {
    %c0_i32 = arith.constant 0 : i32
    %c0_i32_0 = arith.constant 0 : i32
    return %c0_i32, %arg0 : i32, i32
  }
  func.func @transform_3(%arg0: i32, %arg1: i32) -> (i32, i32) {
    %c0_i32 = arith.constant 0 : i32
    %c0_i32_0 = arith.constant 0 : i32
    return %c0_i32, %arg0 : i32, i32
  }
  func.func @transform_4(%arg0: i32, %arg1: i32) -> (i32, i32) {
    %c0_i32 = arith.constant 0 : i32
    %c0_i32_0 = arith.constant 0 : i32
    return %c0_i32, %arg0 : i32, i32
  }
  func.func @transform_5(%arg0: i32, %arg1: i32) -> (i32, i32) {
    %c0_i32 = arith.constant 0 : i32
    return %arg1, %arg0 : i32, i32
  }
}

</mosaic_0001>

<llo_original>
// kernel: tpu_custom_call.1
$region0: #{tpu_custom_call.1}
  #allocation0 [shape = 'u32[]', space=smem, size = 0x4, offset = 0x4, fixed_abs, tag = 'smem constant byte address 0x4 - core index']
  #allocation1 [shape = 'u32[144,128]{1,0:T(1,128)}', space=vmem, size = 0x12000, scoped, tag = 'internal scratch']
  %s0 = inlined_call_operand.hbm [shape: f32[16,32], index: 0, kind: input, shape index: {}]
  %s1 = inlined_call_operand.hbm [shape: f32[16,64], index: 1, kind: input, shape index: {}]
  %s2 = inlined_call_operand.hbm [shape: f32[32,128], index: 2, kind: input, shape index: {}]
  %s3 = inlined_call_operand.hbm [shape: f32[64,128], index: 3, kind: input, shape index: {}]
  %s4 = inlined_call_operand.vmem [shape: f32[1,128], index: 4, kind: input, shape index: {}]
  %s5 = inlined_call_operand.hbm [shape: f32[16,128], index: 5, kind: output, shape index: {}]
  %s6 = sld [smem:[#allocation0]]
  $region46: #{tpu_custom_call.1} parent=0
    _
  %s8 = ssub.s32 1, %s6
  %s9 = scalar_select 0, %s8, %s6
  $region1: #{tpu_custom_call.1} parent=0
    #allocation2 [shape = 'u8[8192]{0}', space=vmem, size = 0x2000, scoped, tag = 'input window, operand 0, single buffered']
    #allocation3 [shape = 's32[1]{0}', space=sflag, size = 0x4, scoped, tag = 'scoped memory for tpu_custom_call.1']
    #allocation4 [shape = 's32[1]{0}', space=sflag, size = 0x4, scoped, tag = 'scoped memory for tpu_custom_call.1']
    #allocation5 [shape = 'u8[8192]{0}', space=vmem, size = 0x2000, scoped, tag = 'input window, operand 1, single buffered']
    #allocation6 [shape = 's32[1]{0}', space=sflag, size = 0x4, scoped, tag = 'scoped memory for tpu_custom_call.1']
    #allocation7 [shape = 'u8[16384]{0}', space=vmem, size = 0x4000, scoped, tag = 'input window, operand 2, single buffered']
    #allocation8 [shape = 'u8[32768]{0}', space=vmem, size = 0x8000, scoped, tag = 'input window, operand 3, single buffered']
    #allocation9 [shape = 's32[1]{0}', space=sflag, size = 0x4, scoped, tag = 'scoped memory for tpu_custom_call.1']
    #allocation10 [shape = 'u8[8192]{0}', space=vmem, size = 0x2000, scoped, tag = 'output window, operand 0, single buffered']
    %10 = vsyncpa [#allocation3], 0
    %11 = vsyncpa [#allocation6], 0
    %12 = vsyncpa [#allocation9], 0
    %13 = vsyncpa [#allocation4], 0
    // Predicated region
    $region2: #{tpu_custom_call.1} parent=1 // pred_check
      _
    $region3: #{tpu_custom_call.1} parent=1 // pred_check_branch
      %15 = sbr.rel (0) target = $region5
    $region4: #{tpu_custom_call.1} parent=1 // pred_region
      %s17 = ssub.s32 256, 256
      %18 = vsyncadd [#allocation3], %s17
      %s19 = sshll.u32 [#allocation2], 4
      %s20 = int_to_ptr.vmem [resolvable:$true] %s19
      %25 = dma.hbm_to_vmem [thread:$0]  %s0, 256, %s20, [#allocation3], 128, 128, 8
    $region5: #{tpu_custom_call.1} parent=1 // pred_fallthru
      _
    // Predicated region
    $region6: #{tpu_custom_call.1} parent=1 // pred_check
      _
    $region7: #{tpu_custom_call.1} parent=1 // pred_check_branch
      %27 = sbr.rel (0) target = $region9
    $region8: #{tpu_custom_call.1} parent=1 // pred_region
      %s29 = ssub.s32 256, 256
      %30 = vsyncadd [#allocation6], %s29
      %s31 = sshll.u32 [#allocation5], 4
      %s32 = int_to_ptr.vmem [resolvable:$true] %s31
      %37 = dma.hbm_to_vmem [thread:$0]  %s1, 256, %s32, [#allocation6], 128, 128, 8
    $region9: #{tpu_custom_call.1} parent=1 // pred_fallthru
      _
    // Predicated region
    $region10: #{tpu_custom_call.1} parent=1 // pred_check
      _
    $region11: #{tpu_custom_call.1} parent=1 // pred_check_branch
      %39 = sbr.rel (0) target = $region13
    $region12: #{tpu_custom_call.1} parent=1 // pred_region
      %s41 = ssub.s32 512, 512
      %42 = vsyncadd [#allocation6], %s41
      %s43 = sshll.u32 [#allocation7], 4
      %s44 = int_to_ptr.vmem [resolvable:$true] %s43
      %49 = dma.hbm_to_vmem [thread:$0]  %s2, 512, %s44, [#allocation6], 128, 128, 8
    $region13: #{tpu_custom_call.1} parent=1 // pred_fallthru
      _
    // Predicated region
    $region14: #{tpu_custom_call.1} parent=1 // pred_check
      _
    $region15: #{tpu_custom_call.1} parent=1 // pred_check_branch
      %51 = sbr.rel (0) target = $region17
    $region16: #{tpu_custom_call.1} parent=1 // pred_region
      %s53 = ssub.s32 1024, 1024
      %54 = vsyncadd [#allocation9], %s53
      %s55 = sshll.u32 [#allocation8], 4
      %s56 = int_to_ptr.vmem [resolvable:$true] %s55
      %61 = dma.hbm_to_vmem [thread:$0]  %s3, 1024, %s56, [#allocation9], 128, 128, 8
    $region17: #{tpu_custom_call.1} parent=1 // pred_fallthru
      _
    // Predicated region
    $region18: #{tpu_custom_call.1} parent=1 // pred_check
      _
    $region19: #{tpu_custom_call.1} parent=1 // pred_check_branch
      %63 = sbr.rel (0) target = $region21
    $region20: #{tpu_custom_call.1} parent=1 // pred_region
      _
    $region21: #{tpu_custom_call.1} parent=1 // pred_fallthru
      _
    // Predicated region
    $region22: #{tpu_custom_call.1} parent=1 // pred_check
      _
    $region23: #{tpu_custom_call.1} parent=1 // pred_check_branch
      %65 = sbr.rel (0) target = $region25
    $region24: #{tpu_custom_call.1} parent=1 // pred_region
      %66 = dma.done [#allocation3], 256
    $region25: #{tpu_custom_call.1} parent=1 // pred_fallthru
      _
    // Predicated region
    $region26: #{tpu_custom_call.1} parent=1 // pred_check
      _
    $region27: #{tpu_custom_call.1} parent=1 // pred_check_branch
      %68 = sbr.rel (0) target = $region29
    $region28: #{tpu_custom_call.1} parent=1 // pred_region
      %69 = dma.done [#allocation6], 256
    $region29: #{tpu_custom_call.1} parent=1 // pred_fallthru
      _
    // Predicated region
    $region30: #{tpu_custom_call.1} parent=1 // pred_check
      _
    $region31: #{tpu_custom_call.1} parent=1 // pred_check_branch
      %71 = sbr.rel (0) target = $region33
    $region32: #{tpu_custom_call.1} parent=1 // pred_region
      %72 = dma.done [#allocation6], 512
    $region33: #{tpu_custom_call.1} parent=1 // pred_fallthru
      _
    // Predicated region
    $region34: #{tpu_custom_call.1} parent=1 // pred_check
      _
    $region35: #{tpu_custom_call.1} parent=1 // pred_check_branch
      %74 = sbr.rel (0) target = $region37
    $region36: #{tpu_custom_call.1} parent=1 // pred_region
      %75 = dma.done [#allocation9], 1024
    $region37: #{tpu_custom_call.1} parent=1 // pred_fallthru
      _
    %v76 = vld [vmem:[#allocation2] sm:$0xff]
    %v77 = vld [vmem:[#allocation2 + $0x8] sm:$0xff]
    %v78 = vld [vmem:[#allocation7] sm:$0xff]
    %v79 = vld [vmem:[#allocation7 + $0x8] sm:$0xff]
    %v80 = vld [vmem:[#allocation7 + $0x10] sm:$0xff]
    %v81 = vld [vmem:[#allocation7 + $0x18] sm:$0xff]
    %v82 = vld [vmem:[#allocation5] sm:$0xff]
    %v83 = vld [vmem:[#allocation5 + $0x8] sm:$0xff]
    %v84 = vld [vmem:[#allocation8] sm:$0xff]
    %v85 = vld [vmem:[#allocation8 + $0x8] sm:$0xff]
    %v86 = vld [vmem:[#allocation8 + $0x10] sm:$0xff]
    %v87 = vld [vmem:[#allocation8 + $0x18] sm:$0xff]
    %v88 = vld [vmem:[#allocation8 + $0x20] sm:$0xff]
    %v89 = vld [vmem:[#allocation8 + $0x28] sm:$0xff]
    %v90 = vld [vmem:[#allocation8 + $0x30] sm:$0xff]
    %v91 = vld [vmem:[#allocation8 + $0x38] sm:$0xff]
    %vm92 = vcmask 523264
    %v94 = vsel %vm92, %v82, 0
    %v97 = vsel %vm92, %v83, 0
    %99 = vmatprep.subr.mxu0 0.0
    %100 = vmatpush1.msra.mxu0 %v84
    %101 = vmatprep.subr.mxu0 0.0
    %102 = vmatpush1.msra.mxu0 %v85
    %103 = vmatprep.subr.mxu0 0.0
    %104 = vmatpush1.msra.mxu0 %v86
    %105 = vmatprep.subr.mxu0 0.0
    %106 = vmatpush1.msra.mxu0 %v87
    %107 = vmatprep.subr.mxu0 0.0
    %108 = vmatpush1.msra.mxu0 %v88
    %109 = vmatprep.subr.mxu0 0.0
    %110 = vmatpush1.msra.mxu0 %v89
    %111 = vmatprep.subr.mxu0 0.0
    %112 = vmatpush1.msra.mxu0 %v90
    %113 = vmatprep.subr.mxu0 0.0
    %114 = vmatpush1.msra.mxu0 %v91
    %115 = vmatprep.subr.mxu0 0.0
    %116 = vmatpush1.msra.mxu0 0.0
    %117 = vmatprep.subr.mxu0 0.0
    %118 = vmatpush1.msra.mxu0 0.0
    %119 = vmatprep.subr.mxu0 0.0
    %120 = vmatpush1.msra.mxu0 0.0
    %121 = vmatprep.subr.mxu0 0.0
    %122 = vmatpush1.msra.mxu0 0.0
    %123 = vmatprep.subr.mxu0 0.0
    %124 = vmatpush1.msra.mxu0 0.0
    %125 = vmatprep.subr.mxu0 0.0
    %126 = vmatpush1.msra.mxu0 0.0
    %127 = vmatprep.subr.mxu0 0.0
    %128 = vmatpush1.msra.mxu0 0.0
    %129 = vmatprep.subr.mxu0 0.0
    %130 = vmatpush1.msra.mxu0 0.0
    %131 = vmatprep.subr.mxu0 0.0
    %132 = vmatpush1.msra.mxu0 0.0
    %133 = vmatprep.subr.mxu0 0.0
    %134 = vmatpush1.msra.mxu0 0.0
    %135 = vmatprep.subr.mxu0 0.0
    %136 = vmatpush1.msra.mxu0 0.0
    %137 = vmatprep.subr.mxu0 0.0
    %138 = vmatpush1.msra.mxu0 0.0
    %139 = vmatprep.subr.mxu0 0.0
    %140 = vmatpush1.msra.mxu0 0.0
    %141 = vmatprep.subr.mxu0 0.0
    %142 = vmatpush1.msra.mxu0 0.0
    %143 = vmatprep.subr.mxu0 0.0
    %144 = vmatpush1.msra.mxu0 0.0
    %145 = vmatprep.subr.mxu0 0.0
    %146 = vmatpush1.msra.mxu0 0.0
    %147 = vmatprep.subr.mxu0 0.0
    %148 = vmatpush1.msra.mxu0 0.0
    %149 = vmatprep.subr.mxu0 0.0
    %150 = vmatpush1.msra.mxu0 0.0
    %151 = vmatprep.subr.mxu0 0.0
    %152 = vmatpush1.msra.mxu0 0.0
    %153 = vmatprep.subr.mxu0 0.0
    %154 = vmatpush1.msra.mxu0 0.0
    %155 = vmatprep.subr.mxu0 0.0
    %156 = vmatpush1.msra.mxu0 0.0
    %157 = vmatprep.subr.mxu0 0.0
    %158 = vmatpush1.msra.mxu0 0.0
    %159 = vmatprep.subr.mxu0 0.0
    %160 = vmatpush1.msra.mxu0 0.0
    %161 = vmatprep.subr.mxu0 0.0
    %162 = vmatpush1.msra.mxu0 0.0
    %163 = vmatprep.mubr.f32.mxu0 0.0
    %164 = vmatmul.mubr.f32.gmra.mrb[0].mxu0 %v94
    %v165 = vpop.f32.mrb[0].mxu0
    %v166 = vadd.f32 0.0, %v165
    %v167 = vpop.f32.mrb[0].mxu0
    %168 = vmatprep.mubr.f32.mxu0 0.0
    %169 = vmatmul.mubr.f32.gmra.mrb[0].mxu0 %v97
    %v170 = vpop.f32.mrb[0].mxu0
    %v171 = vadd.f32 0.0, %v170
    %v172 = vpop.f32.mrb[0].mxu0
    %173 = vdwg.mxu0
    %vm174 = vcmask 261120
    %v176 = vsel %vm174, %v76, 0
    %v179 = vsel %vm174, %v77, 0
    %181 = vmatprep.subr.mxu0 0.0
    %182 = vmatpush1.msra.mxu0 %v78
    %183 = vmatprep.subr.mxu0 0.0
    %184 = vmatpush1.msra.mxu0 %v79
    %185 = vmatprep.subr.mxu0 0.0
    %186 = vmatpush1.msra.mxu0 %v80
    %187 = vmatprep.subr.mxu0 0.0
    %188 = vmatpush1.msra.mxu0 %v81
    %189 = vmatprep.subr.mxu0 0.0
    %190 = vmatpush1.msra.mxu0 0.0
    %191 = vmatprep.subr.mxu0 0.0
    %192 = vmatpush1.msra.mxu0 0.0
    %193 = vmatprep.subr.mxu0 0.0
    %194 = vmatpush1.msra.mxu0 0.0
    %195 = vmatprep.subr.mxu0 0.0
    %196 = vmatpush1.msra.mxu0 0.0
    %197 = vmatprep.subr.mxu0 0.0
    %198 = vmatpush1.msra.mxu0 0.0
    %199 = vmatprep.subr.mxu0 0.0
    %200 = vmatpush1.msra.mxu0 0.0
    %201 = vmatprep.subr.mxu0 0.0
    %202 = vmatpush1.msra.mxu0 0.0
    %203 = vmatprep.subr.mxu0 0.0
    %204 = vmatpush1.msra.mxu0 0.0
    %205 = vmatprep.subr.mxu0 0.0
    %206 = vmatpush1.msra.mxu0 0.0
    %207 = vmatprep.subr.mxu0 0.0
    %208 = vmatpush1.msra.mxu0 0.0
    %209 = vmatprep.subr.mxu0 0.0
    %210 = vmatpush1.msra.mxu0 0.0
    %211 = vmatprep.subr.mxu0 0.0
    %212 = vmatpush1.msra.mxu0 0.0
    %213 = vmatprep.subr.mxu0 0.0
    %214 = vmatpush1.msra.mxu0 0.0
    %215 = vmatprep.subr.mxu0 0.0
    %216 = vmatpush1.msra.mxu0 0.0
    %217 = vmatprep.subr.mxu0 0.0
    %218 = vmatpush1.msra.mxu0 0.0
    %219 = vmatprep.subr.mxu0 0.0
    %220 = vmatpush1.msra.mxu0 0.0
    %221 = vmatprep.subr.mxu0 0.0
    %222 = vmatpush1.msra.mxu0 0.0
    %223 = vmatprep.subr.mxu0 0.0
    %224 = vmatpush1.msra.mxu0 0.0
    %225 = vmatprep.subr.mxu0 0.0
    %226 = vmatpush1.msra.mxu0 0.0
    %227 = vmatprep.subr.mxu0 0.0
    %228 = vmatpush1.msra.mxu0 0.0
    %229 = vmatprep.subr.mxu0 0.0
    %230 = vmatpush1.msra.mxu0 0.0
    %231 = vmatprep.subr.mxu0 0.0
    %232 = vmatpush1.msra.mxu0 0.0
    %233 = vmatprep.subr.mxu0 0.0
    %234 = vmatpush1.msra.mxu0 0.0
    %235 = vmatprep.subr.mxu0 0.0
    %236 = vmatpush1.msra.mxu0 0.0
    %237 = vmatprep.subr.mxu0 0.0
    %238 = vmatpush1.msra.mxu0 0.0
    %239 = vmatprep.subr.mxu0 0.0
    %240 = vmatpush1.msra.mxu0 0.0
    %241 = vmatprep.subr.mxu0 0.0
    %242 = vmatpush1.msra.mxu0 0.0
    %243 = vmatprep.subr.mxu0 0.0
    %244 = vmatpush1.msra.mxu0 0.0
    %245 = vmatprep.mubr.f32.mxu0 0.0
    %246 = vmatmul.mubr.f32.gmra.mrb[0].mxu0 %v176
    %v247 = vpop.f32.mrb[0].mxu0
    %v248 = vadd.f32 %v166, %v247
    %v249 = vpop.f32.mrb[0].mxu0
    %250 = vmatprep.mubr.f32.mxu0 0.0
    %251 = vmatmul.mubr.f32.gmra.mrb[0].mxu0 %v179
    %v252 = vpop.f32.mrb[0].mxu0
    %v253 = vadd.f32 %v171, %v252
    %v254 = vpop.f32.mrb[0].mxu0
    %255 = vdwg.mxu0
    %v256 = vld [vmem:[%s4] sm:$0x1]
    %v258 = vlaneseq
    %v259 = vshrl.u32 %v258, 7
    %v260 = vsub.s32 0, %v259
    %v261 = vrot.slane %v256, %v260
    %v263 = vadd.f32 %v248, %v261
    %v264 = vadd.f32 %v253, %v261
    %265 = vst [vmem:[#allocation10] sm:$0xff] %v263
    %266 = vst [vmem:[#allocation10 + $0x8] sm:$0xff] %v264
    // Predicated region
    $region38: #{tpu_custom_call.1} parent=1 // pred_check
      _
    $region39: #{tpu_custom_call.1} parent=1 // pred_check_branch
      %268 = sbr.rel (0) target = $region41
    $region40: #{tpu_custom_call.1} parent=1 // pred_region
      %s270 = ssub.s32 256, 256
      %271 = vsyncadd [#allocation4], %s270
      %s272 = sshll.u32 [#allocation10], 4
      %s273 = int_to_ptr.vmem [resolvable:$true] %s272
      %278 = dma.vmem_to_hbm [thread:$0]  %s273, 256, %s5, [#allocation4], 128, 128, 8
    $region41: #{tpu_custom_call.1} parent=1 // pred_fallthru
      _
    // Predicated region
    $region42: #{tpu_custom_call.1} parent=1 // pred_check
      _
    $region43: #{tpu_custom_call.1} parent=1 // pred_check_branch
      %280 = sbr.rel (0) target = $region45
    $region44: #{tpu_custom_call.1} parent=1 // pred_region
      %281 = dma.done [#allocation4], 256
    $region45: #{tpu_custom_call.1} parent=1 // pred_fallthru
      _
    %282 = vsyncpa [#allocation3], 1
    %283 = vsyncpa [#allocation6], 1
    %284 = vsyncpa [#allocation9], 1
    %285 = vsyncpa [#allocation4], 1

</llo_original>
